<compile_context>
chip_gen: v5e
topology: v5e:2x2
jax: 0.10.0
libtpu: 0.0.40
codegen_flags: <defaults>
</compile_context>

<pallas_src>
import jax
import jax.numpy as jnp
from jax import lax
from jax.experimental import pallas as pl
from jax.experimental.pallas import tpu as pltpu

LANES = 128
CHUNK = 64            # rows per in-register chunk on the lane-dense hot path
MAX_FOLD_LANE = 8192  # cap for folding trailing dims into the lane axis


def _round_up(a, b):
    return (a + b - 1) // b * b


def _tpu_config():
    """(num_tensorcores, tile_bytes_per_input, vmem_limit_bytes) per generation."""
    kind = ""
    try:
        kind = jax.devices()[0].device_kind.lower()
    except Exception:
        pass
    if "v7" in kind:                      # 2 TCs, 64 MiB physical VMEM
        return 2, 4 << 20, 48 << 20
    if "v6" in kind:                      # 1 TC, 128 MiB physical VMEM
        return 1, 4 << 20, 64 << 20
    if "v5p" in kind or "v4" in kind:     # megacore chips
        return 2, 2 << 20, 64 << 20
    if "v5" in kind:                      # v5e / v5 lite
        return 1, 2 << 20, 64 << 20
    return 1, 1 << 20, None               # unknown: conservative, default VMEM limit


def _make_kernel(*, rows, tile_rows, tps, lane, sub, hot, needs_mask):
    """Build the kernel, specialised on static tiling config (Python closure)."""

    def _bce(r, t, row_start, nrows):
        r = r.astype(jnp.float32)
        t = t.astype(jnp.float32)
        if needs_mask:
            # Mask out-of-range rows BEFORE the logs: r = t = 1.0 -> exactly 0
            # after PyTorch's clamp-before-multiply, and no NaN can leak.
            rid = row_start + lax.broadcasted_iota(jnp.int32, (nrows, lane), 0)
            valid = rid < rows
            r = jnp.where(valid, r, 1.0)
            t = jnp.where(valid, t, 1.0)
        # torch.nn.functional.binary_cross_entropy clamps the log terms at -100.
        log_r = jnp.maximum(jnp.log(r), -100.0)
        log_1mr = jnp.maximum(jnp.log(1.0 - r), -100.0)
        return -(t * log_r + (1.0 - t) * log_1mr)

    def kernel(recon_ref, x_ref, mu_ref, logvar_ref, part_ref, acc_ref):
        c = pl.program_id(0)             # split ("parallel") axis
        i = pl.program_id(1)             # streaming reduction ("arbitrary") axis
        last = pl.num_programs(1) - 1
        row0 = (c * tps + i) * tile_rows  # logical (un-clamped) tile origin

        @pl.when(i == 0)
        def _init():
            acc_ref[...] = jnp.zeros_like(acc_ref)

        if hot:
            # Stream the tile through vregs in (CHUNK, 128) chunks so the BCE
            # chain never materialises a tile-sized VMEM temporary; partial
            # sums stay in an (8, 128) vreg carry (VPU-only adds).
            def chunk_body(k, carry):
                off = pl.multiple_of(k * CHUNK, CHUNK)
                bce = _bce(recon_ref[pl.ds(off, CHUNK), :],
                           x_ref[pl.ds(off, CHUNK), :],
                           row0 + off, CHUNK)
                return carry + jnp.sum(bce.reshape(CHUNK // 8, 8, lane), axis=0)

            part = lax.fori_loop(0, tile_rows // CHUNK, chunk_body,
                                 jnp.zeros((sub, lane), jnp.float32), unroll=2)
            acc_ref[...] += part
        else:
            # Small / odd-shaped tiles: whole-tile compute is fine.
            bce = _bce(recon_ref[...], x_ref[...], row0, tile_rows)
            if sub == 8:
                acc_ref[...] += jnp.sum(bce.reshape(tile_rows // 8, 8, lane), axis=0)
            else:
                acc_ref[...] += jnp.sum(bce, axis=0, keepdims=True)

        # KLD is O(B*Z) and trivial; fold it into split 0's partials once.
        @pl.when(jnp.logical_and(i == last, c == 0))
        def _add_kld():
            mu = mu_ref[...].astype(jnp.float32)
            lv = logvar_ref[...].astype(jnp.float32)
            kld = -0.5 * jnp.sum(1.0 + lv - mu * mu - jnp.exp(lv))
            rr = lax.broadcasted_iota(jnp.int32, (sub, lane), 0)
            ll = lax.broadcasted_iota(jnp.int32, (sub, lane), 1)
            acc_ref[...] += jnp.where((rr == 0) & (ll == 0), kld, 0.0)

        @pl.when(i == last)
        def _finalize():
            part_ref[0] = acc_ref[...]

    return kernel


def vae_loss(recon_x, x, mu, logvar, *, tile_bytes=None, force_splits=None):
    """BCE(recon_x, x, reduction='sum') + KLD(mu, logvar) as a scalar f32."""
    total = recon_x.size
    flat_r = recon_x.reshape(-1)
    flat_x = x.reshape(-1)

    # ---- copy-free 2-D view of the flattened data -------------------------
    if total % LANES == 0:
        lane = LANES                               # ideal lane-dense slab
    else:
        lane = 1                                   # fold trailing dims (pure reshape)
        for d in reversed(recon_x.shape):
            lane *= int(d)
            if lane >= LANES:
                break
        if lane > MAX_FOLD_LANE:
            # Rare fallback (huge non-128-divisible trailing dims): pad to a
            # lane multiple; recon = x = 1.0 contributes exactly 0 BCE.
            lane = LANES
            pad = _round_up(total, LANES) - total
            flat_r = jnp.concatenate([flat_r, jnp.ones((pad,), flat_r.dtype)])
            flat_x = jnp.concatenate([flat_x, jnp.ones((pad,), flat_x.dtype)])
    rows = flat_r.size // lane
    recon2d = flat_r.reshape(rows, lane)
    x2d = flat_x.reshape(rows, lane)

    mu2 = mu.reshape(mu.shape[0], -1) if mu.ndim >= 2 else mu.reshape(1, -1)
    lv2 = logvar.reshape(logvar.shape[0], -1) if logvar.ndim >= 2 else logvar.reshape(1, -1)

    # ---- generation-aware tiling ------------------------------------------
    cores, gen_tile_bytes, vmem_limit = _tpu_config()
    if tile_bytes is None:
        tile_bytes = gen_tile_bytes

    hot = (lane == LANES) and (rows >= CHUNK)
    quantum = CHUNK if hot else 8
    if not hot:
        tile_bytes = min(tile_bytes, 512 << 10)    # whole-tile path: keep temps small
    row_bytes = 4 * _round_up(lane, LANES)
    max_tile_rows = max(quantum, (tile_bytes // row_bytes) // quantum * quantum)

    if force_splits is not None:
        splits = force_splits
    else:
        splits = cores if (cores > 1 and rows >= 1024) else 1

    rows_per_split = pl.cdiv(rows, splits)
    if rows < quantum:
        tile_rows = rows                           # block == full array rows
    else:
        tiles0 = pl.cdiv(rows_per_split, max_tile_rows)
        tile_rows = min(max_tile_rows,
                        _round_up(pl.cdiv(rows_per_split, tiles0), quantum))
    nblocks = pl.cdiv(rows, tile_rows)             # natural block count
    tps = pl.cdiv(nblocks, splits)                 # tiles per split
    needs_mask = (nblocks * tile_rows != rows) or (splits * tps != nblocks)
    sub = 8 if (tile_rows % 8 == 0 and lane % LANES == 0) else 1

    def img_index(c, i):
        # Clamp so every DMA stays in-bounds; over-coverage blocks are fully
        # masked in-kernel (they use the logical, un-clamped index for masking).
        return (jnp.minimum(c * tps + i, nblocks - 1), 0)

    img_spec = pl.BlockSpec((tile_rows, lane), img_index)
    mu_spec = pl.BlockSpec(mu2.shape, lambda c, i: (0, 0))     # resident
    lv_spec = pl.BlockSpec(lv2.shape, lambda c, i: (0, 0))     # resident

    kernel = _make_kernel(rows=rows, tile_rows=tile_rows, tps=tps, lane=lane,
                          sub=sub, hot=hot, needs_mask=needs_mask)

    bytes_accessed = int(flat_r.size * flat_r.dtype.itemsize
                         + flat_x.size * flat_x.dtype.itemsize
                         + mu2.size * mu2.dtype.itemsize
                         + lv2.size * lv2.dtype.itemsize
                         + splits * sub * lane * 4)
    cost = pl.CostEstimate(flops=7 * total + 6 * mu2.size,
                           transcendentals=2 * total + mu2.size,
                           bytes_accessed=bytes_accessed)

    cp_kwargs = dict(dimension_semantics=("parallel", "arbitrary"))
    if vmem_limit is not None:
        cp_kwargs["vmem_limit_bytes"] = int(vmem_limit)

    partials = pl.pallas_call(
        kernel,
        out_shape=jax.ShapeDtypeStruct((splits, sub, lane), jnp.float32),
        grid_spec=pltpu.PrefetchScalarGridSpec(
            num_scalar_prefetch=0,
            grid=(splits, tps),
            in_specs=[img_spec, img_spec, mu_spec, lv_spec],
            out_specs=pl.BlockSpec((1, sub, lane), lambda c, i: (c, 0, 0)),
            scratch_shapes=[pltpu.VMEM((sub, lane), jnp.float32)],
        ),
        compiler_params=pltpu.CompilerParams(**cp_kwargs),
        cost_estimate=cost,
    )(recon2d, x2d, mu2, lv2)

    # Tiny final combine of the splits*sub*lane partials (KLD already folded in).
    return jnp.sum(partials)


def _reference(recon_x, x, mu, logvar):
    r = recon_x.astype(jnp.float32)
    t = x.astype(jnp.float32)
    bce = -jnp.sum(t * jnp.maximum(jnp.log(r), -100.0)
                   + (1.0 - t) * jnp.maximum(jnp.log(1.0 - r), -100.0))
    lv = logvar.astype(jnp.float32)
    m = mu.astype(jnp.float32)
    kld = -0.5 * jnp.sum(1.0 + lv - m * m - jnp.exp(lv))
    return bce + kld


if __name__ == "__main__":
    def _check(shape, z, key, dtype=jnp.float32, **kw):
        k1, k2, k3, k4 = jax.random.split(key, 4)
        n = shape[0]
        recon_x = jax.nn.sigmoid(jax.random.normal(k1, shape, jnp.float32)).astype(dtype)
        x = jax.random.uniform(k2, shape, jnp.float32).astype(dtype)
        mu = jax.random.normal(k3, (n, z), jnp.float32)
        logvar = 0.1 * jax.random.normal(k4, (n, z), jnp.float32)
        loss = jax.block_until_ready(vae_loss(recon_x, x, mu, logvar, **kw))
        ref = _reference(recon_x, x, mu, logvar)
        assert jnp.allclose(loss, ref, rtol=1e-4, atol=1e-2), (shape, kw, loss, ref)

    keys = jax.random.split(jax.random.PRNGKey(0), 5)
    # Basic lane-dense case (element count divisible by 128).
    _check((2, 4, 16, 16), 32, keys[0])
    # Element count NOT divisible by 128: copy-free (batch, 784) fold, no padding.
    _check((2, 1, 28, 28), 32, keys[1])
    # Rows not a multiple of 8: exercises partial-block row masking.
    _check((2, 4, 20, 16), 8, keys[2])
    # Multi-tile, 2-way split, clamped (dead) trailing block, chunked hot path.
    _check((24, 4, 32, 16), 16, keys[3], tile_bytes=64 << 10, force_splits=2)
    # bf16 inputs stay bf16 on the wire (half the HBM traffic); accumulation is f32.
    _check((2, 4, 16, 16), 32, keys[4], dtype=jnp.bfloat16)

    print("KERNEL_OK")
</pallas_src>

<mosaic_0001>
module attributes {stable_mosaic.version = 11 : i64} {
  func.func @kernel(%arg0: i32, %arg1: i32, %arg2: memref<16x128xf32, #tpu.memory_space<vmem>>, %arg3: memref<16x128xf32, #tpu.memory_space<vmem>>, %arg4: memref<2x32xf32, #tpu.memory_space<vmem>>, %arg5: memref<2x32xf32, #tpu.memory_space<vmem>>, %arg6: memref<1x8x128xf32, #tpu.memory_space<vmem>>, %arg7: memref<8x128xf32, #tpu.memory_space<vmem>>) attributes {dimension_semantics = [#tpu.dimension_semantics<parallel>, #tpu.dimension_semantics<arbitrary>], iteration_bounds = array<i64: 1, 1>, scalar_prefetch = 0 : i64, scratch_operands = 1 : i64, tpu.core_type = #tpu.core_type<tc>, window_params = [{transform_indices = @transform_0, window_bounds = array<i64: 16, 128>}, {transform_indices = @transform_1, window_bounds = array<i64: 16, 128>}, {pipeline_mode = #tpu.pipeline_mode<synchronous>, transform_indices = @transform_2, window_bounds = array<i64: 2, 32>}, {pipeline_mode = #tpu.pipeline_mode<synchronous>, transform_indices = @transform_3, window_bounds = array<i64: 2, 32>}, {transform_indices = @transform_4, window_bounds = array<i64: 1, 8, 128>}]} {
    %c0_i32 = arith.constant 0 : i32
    %0 = arith.cmpi eq, %arg1, %c0_i32 : i32
    %1 = arith.extui %0 : i1 to i32
    %c0_i32_0 = arith.constant 0 : i32
    %2 = arith.cmpi ne, %1, %c0_i32_0 : i32
    scf.if %2 {
      %cst_18 = arith.constant 0.000000e+00 : f32
      %33 = vector.broadcast %cst_18 : f32 to vector<8x128xf32>
      %c0_19 = arith.constant 0 : index
      %c0_20 = arith.constant 0 : index
      %34 = vector.load %arg7[%c0_19, %c0_20] : memref<8x128xf32, #tpu.memory_space<vmem>>, vector<8x128xf32>
      tpu.vector_store %arg7[%c0_19, %c0_20], %33 {strides = array<i32>} : memref<8x128xf32, #tpu.memory_space<vmem>>, vector<8x128xf32>,
    } else {
    }
    %c0 = arith.constant 0 : index
    %c0_1 = arith.constant 0 : index
    %3 = vector.load %arg2[%c0, %c0_1] : memref<16x128xf32, #tpu.memory_space<vmem>>, vector<16x128xf32>
    %c0_2 = arith.constant 0 : index
    %c0_3 = arith.constant 0 : index
    %4 = vector.load %arg3[%c0_2, %c0_3] : memref<16x128xf32, #tpu.memory_space<vmem>>, vector<16x128xf32>
    %5 = math.log %3 : vector<16x128xf32>
    %cst = arith.constant -1.000000e+02 : f32
    %6 = vector.broadcast %cst : f32 to vector<16x128xf32>
    %7 = arith.maximumf %5, %6 : vector<16x128xf32>
    %cst_4 = arith.constant 1.000000e+00 : f32
    %8 = vector.broadcast %cst_4 : f32 to vector<16x128xf32>
    %9 = arith.subf %8, %3 : vector<16x128xf32>
    %10 = math.log %9 : vector<16x128xf32>
    %cst_5 = arith.constant -1.000000e+02 : f32
    %11 = vector.broadcast %cst_5 : f32 to vector<16x128xf32>
    %12 = arith.maximumf %10, %11 : vector<16x128xf32>
    %13 = arith.mulf %4, %7 : vector<16x128xf32>
    %cst_6 = arith.constant 1.000000e+00 : f32
    %14 = vector.broadcast %cst_6 : f32 to vector<16x128xf32>
    %15 = arith.subf %14, %4 : vector<16x128xf32>
    %16 = arith.mulf %15, %12 : vector<16x128xf32>
    %17 = arith.addf %13, %16 : vector<16x128xf32>
    %cst_7 = arith.constant 0.000000e+00 : f32
    %18 = vector.broadcast %cst_7 : f32 to vector<16x128xf32>
    %19 = arith.subf %18, %17 : vector<16x128xf32>
    %c0_8 = arith.constant 0 : index
    %c0_9 = arith.constant 0 : index
    %20 = vector.load %arg7[%c0_8, %c0_9] : memref<8x128xf32, #tpu.memory_space<vmem>>, vector<8x128xf32>
    %21 = vector.shape_cast %19 : vector<16x128xf32> to vector<2x8x128xf32>
    %cst_10 = arith.constant dense<0.000000e+00> : vector<8x128xf32>
    %22 = vector.multi_reduction <add>, %21, %cst_10 [0] : vector<2x8x128xf32> to vector<8x128xf32>
    %23 = arith.addf %20, %22 : vector<8x128xf32>
    %c0_11 = arith.constant 0 : index
    %c0_12 = arith.constant 0 : index
    %24 = vector.load %arg7[%c0_11, %c0_12] : memref<8x128xf32, #tpu.memory_space<vmem>>, vector<8x128xf32>
    tpu.vector_store %arg7[%c0_11, %c0_12], %23 {strides = array<i32>} : memref<8x128xf32, #tpu.memory_space<vmem>>, vector<8x128xf32>,
    %c0_i32_13 = arith.constant 0 : i32
    %25 = arith.cmpi eq, %arg1, %c0_i32_13 : i32
    %c0_i32_14 = arith.constant 0 : i32
    %26 = arith.cmpi eq, %arg0, %c0_i32_14 : i32
    %27 = arith.andi %25, %26 : i1
    %28 = arith.extui %27 : i1 to i32
    %c0_i32_15 = arith.constant 0 : i32
    %29 = arith.cmpi ne, %28, %c0_i32_15 : i32
    scf.if %29 {
      %c0_18 = arith.constant 0 : index
      %c0_19 = arith.constant 0 : index
      %33 = vector.load %arg4[%c0_18, %c0_19] : memref<2x32xf32, #tpu.memory_space<vmem>>, vector<2x32xf32>
      %c0_20 = arith.constant 0 : index
      %c0_21 = arith.constant 0 : index
      %34 = vector.load %arg5[%c0_20, %c0_21] : memref<2x32xf32, #tpu.memory_space<vmem>>, vector<2x32xf32>
      %cst_22 = arith.constant 1.000000e+00 : f32
      %35 = vector.broadcast %cst_22 : f32 to vector<2x32xf32>
      %36 = arith.addf %35, %34 : vector<2x32xf32>
      %37 = arith.mulf %33, %33 : vector<2x32xf32>
      %38 = arith.subf %36, %37 : vector<2x32xf32>
      %39 = math.exp %34 : vector<2x32xf32>
      %40 = arith.subf %38, %39 : vector<2x32xf32>
      %41 = vector.shape_cast %40 : vector<2x32xf32> to vector<1x2x32xf32>
      %cst_23 = arith.constant dense<0.000000e+00> : vector<1xf32>
      %42 = vector.multi_reduction <add>, %41, %cst_23 [1, 2] : vector<1x2x32xf32> to vector<1xf32>
      %43 = vector.shape_cast %42 : vector<1xf32> to vector<1x1x1xf32>
      %44 = vector.extract %43[0, 0, 0] : f32 from vector<1x1x1xf32>
      %cst_24 = arith.constant -5.000000e-01 : f32
      %45 = arith.mulf %cst_24, %44 : f32
      %46 = tpu.iota {dimensions = array<i32: 0>} : vector<8x128xi32>
      %47 = tpu.iota {dimensions = array<i32: 1>} : vector<8x128xi32>
      %c0_25 = arith.constant 0 : index
      %c0_26 = arith.constant 0 : index
      %48 = vector.load %arg7[%c0_25, %c0_26] : memref<8x128xf32, #tpu.memory_space<vmem>>, vector<8x128xf32>
      %c0_i32_27 = arith.constant 0 : i32
      %49 = vector.broadcast %c0_i32_27 : i32 to vector<8x128xi32>
      %50 = arith.cmpi eq, %46, %49 : vector<8x128xi32>
      %c0_i32_28 = arith.constant 0 : i32
      %51 = vector.broadcast %c0_i32_28 : i32 to vector<8x128xi32>
      %52 = arith.cmpi eq, %47, %51 : vector<8x128xi32>
      %53 = arith.andi %50, %52 : vector<8x128xi1>
      %cst_29 = arith.constant 0.000000e+00 : f32
      %54 = vector.broadcast %45 : f32 to vector<8x128xf32>
      %55 = vector.broadcast %cst_29 : f32 to vector<8x128xf32>
      %56 = arith.select %53, %54, %55 : vector<8x128xi1>, vector<8x128xf32>
      %57 = arith.addf %48, %56 : vector<8x128xf32>
      %c0_30 = arith.constant 0 : index
      %c0_31 = arith.constant 0 : index
      %58 = vector.load %arg7[%c0_30, %c0_31] : memref<8x128xf32, #tpu.memory_space<vmem>>, vector<8x128xf32>
      tpu.vector_store %arg7[%c0_30, %c0_31], %57 {strides = array<i32>} : memref<8x128xf32, #tpu.memory_space<vmem>>, vector<8x128xf32>,
    } else {
    }
    %c0_i32_16 = arith.constant 0 : i32
    %30 = arith.cmpi eq, %arg1, %c0_i32_16 : i32
    %31 = arith.extui %30 : i1 to i32
    %c0_i32_17 = arith.constant 0 : i32
    %32 = arith.cmpi ne, %31, %c0_i32_17 : i32
    scf.if %32 {
      %c0_18 = arith.constant 0 : index
      %c0_19 = arith.constant 0 : index
      %33 = vector.load %arg7[%c0_18, %c0_19] : memref<8x128xf32, #tpu.memory_space<vmem>>, vector<8x128xf32>
      %c0_20 = arith.constant 0 : index
      %c0_21 = arith.constant 0 : index
      %c0_22 = arith.constant 0 : index
      %34 = vector.load %arg6[%c0_20, %c0_21, %c0_22] : memref<1x8x128xf32, #tpu.memory_space<vmem>>, vector<1x8x128xf32>
      %35 = vector.shape_cast %34 : vector<1x8x128xf32> to vector<8x128xf32>
      %36 = vector.shape_cast %33 : vector<8x128xf32> to vector<1x8x128xf32>
      tpu.vector_store %arg6[%c0_20, %c0_21, %c0_22], %36 {strides = array<i32>} : memref<1x8x128xf32, #tpu.memory_space<vmem>>, vector<1x8x128xf32>,
    } else {
    }
    return
  }
  func.func @transform_0(%arg0: i32, %arg1: i32) -> (i32, i32) {
    %c1_i32 = arith.constant 1 : i32
    %0 = arith.muli %arg0, %c1_i32 : i32
    %1 = arith.addi %0, %arg1 : i32
    %c0_i32 = arith.constant 0 : i32
    %2 = arith.minsi %1, %c0_i32 : i32
    %c0_i32_0 = arith.constant 0 : i32
    %c0_i32_1 = arith.constant 0 : i32
    return %2, %c0_i32_0 : i32, i32
  }
  func.func @transform_1(%arg0: i32, %arg1: i32) -> (i32, i32) {
    %c1_i32 = arith.constant 1 : i32
    %0 = arith.muli %arg0, %c1_i32 : i32
    %1 = arith.addi %0, %arg1 : i32
    %c0_i32 = arith.constant 0 : i32
    %2 = arith.minsi %1, %c0_i32 : i32
    %c0_i32_0 = arith.constant 0 : i32
    %c0_i32_1 = arith.constant 0 : i32
    return %2, %c0_i32_0 : i32, i32
  }
  func.func @transform_2(%arg0: i32, %arg1: i32) -> (i32, i32) {
    %c0_i32 = arith.constant 0 : i32
    %c0_i32_0 = arith.constant 0 : i32
    %c0_i32_1 = arith.constant 0 : i32
    return %c0_i32, %c0_i32_0 : i32, i32
  }
  func.func @transform_3(%arg0: i32, %arg1: i32) -> (i32, i32) {
    %c0_i32 = arith.constant 0 : i32
    %c0_i32_0 = arith.constant 0 : i32
    %c0_i32_1 = arith.constant 0 : i32
    return %c0_i32, %c0_i32_0 : i32, i32
  }
  func.func @transform_4(%arg0: i32, %arg1: i32) -> (i32, i32, i32) {
    %c0_i32 = arith.constant 0 : i32
    %c0_i32_0 = arith.constant 0 : i32
    %c0_i32_1 = arith.constant 0 : i32
    return %arg0, %c0_i32, %c0_i32_0 : i32, i32, i32
  }
}

</mosaic_0001>

<llo_original>
// kernel: tpu_custom_call.1
$region0: #{tpu_custom_call.1}
  #allocation0 [shape = 'u32[]', space=smem, size = 0x4, offset = 0x4, fixed_abs, tag = 'smem constant byte address 0x4 - core index']
  #allocation1 [shape = 'u32[72,128]{1,0:T(1,128)}', space=vmem, size = 0x9000, scoped, tag = 'internal scratch']
  #allocation2 [shape = 'f32[8,128]{1,0:T(8,128)}', space=vmem, size = 0x1000, scoped, tag = 'scratch operand']
  %s0 = inlined_call_operand.hbm [shape: f32[16,128], index: 0, kind: input, shape index: {}]
  %s1 = inlined_call_operand.hbm [shape: f32[16,128], index: 1, kind: input, shape index: {}]
  %s2 = inlined_call_operand.hbm [shape: f32[2,32], index: 2, kind: input, shape index: {}]
  %s3 = inlined_call_operand.vmem [shape: f32[2,32], index: 3, kind: input, shape index: {}]
  %s4 = inlined_call_operand.hbm [shape: f32[1,8,128], index: 4, kind: output, shape index: {}]
  %s5 = sld [smem:[#allocation0]]
  $region50: #{tpu_custom_call.1} parent=0
    _
  %s7 = ssub.s32 1, %s5
  %s8 = scalar_select 0, %s7, %s5
  $region1: #{tpu_custom_call.1} parent=0
    #allocation3 [shape = 'u8[8192]{0}', space=vmem, size = 0x2000, scoped, tag = 'input window, operand 0, single buffered']
    #allocation4 [shape = 's32[1]{0}', space=sflag, size = 0x4, scoped, tag = 'scoped memory for tpu_custom_call.1']
    #allocation5 [shape = 's32[1]{0}', space=sflag, size = 0x4, scoped, tag = 'scoped memory for tpu_custom_call.1']
    #allocation6 [shape = 'u8[8192]{0}', space=vmem, size = 0x2000, scoped, tag = 'input window, operand 1, single buffered']
    #allocation7 [shape = 's32[1]{0}', space=sflag, size = 0x4, scoped, tag = 'scoped memory for tpu_custom_call.1']
    #allocation8 [shape = 'u8[1024]{0}', space=vmem, size = 0x400, scoped, tag = 'input window, operand 2, single buffered']
    #allocation9 [shape = 'u8[4096]{0}', space=vmem, size = 0x1000, scoped, tag = 'output window, operand 0, single buffered']
    %9 = vsyncpa [#allocation4], 0
    %10 = vsyncpa [#allocation7], 0
    %11 = vsyncpa [#allocation5], 0
    // Predicated region
    $region2: #{tpu_custom_call.1} parent=1 // pred_check
      _
    $region3: #{tpu_custom_call.1} parent=1 // pred_check_branch
      %13 = sbr.rel (0) target = $region5
    $region4: #{tpu_custom_call.1} parent=1 // pred_region
      %s14 = sadd.s32 0, 0
      %p15 = scmp.lt.s32.totalorder %s14, 0
      %s16 = scalar_select %p15, %s14, 0
      %s17 = smul.u32 2, %s16
      %19 = vsyncadd [#allocation4], 0
      %s20 = smul.addr %s17, 8
      %s21 = scalar_lea.hbm %s0, %s20
      %s22 = sshll.u32 %s21, 4
      %s23 = int_to_ptr.hbm [resolvable:$true] %s22
      %s24 = sshll.u32 [#allocation3], 4
      %s25 = int_to_ptr.vmem [resolvable:$true] %s24
      %30 = dma.hbm_to_vmem [thread:$0]  %s23, 256, %s25, [#allocation4], 128, 128, 8
    $region5: #{tpu_custom_call.1} parent=1 // pred_fallthru
      _
    // Predicated region
    $region6: #{tpu_custom_call.1} parent=1 // pred_check
      _
    $region7: #{tpu_custom_call.1} parent=1 // pred_check_branch
      %32 = sbr.rel (0) target = $region9
    $region8: #{tpu_custom_call.1} parent=1 // pred_region
      %s33 = sadd.s32 0, 0
      %p34 = scmp.lt.s32.totalorder %s33, 0
      %s35 = scalar_select %p34, %s33, 0
      %s36 = smul.u32 2, %s35
      %38 = vsyncadd [#allocation7], 0
      %s39 = smul.addr %s36, 8
      %s40 = scalar_lea.hbm %s1, %s39
      %s41 = sshll.u32 %s40, 4
      %s42 = int_to_ptr.hbm [resolvable:$true] %s41
      %s43 = sshll.u32 [#allocation6], 4
      %s44 = int_to_ptr.vmem [resolvable:$true] %s43
      %49 = dma.hbm_to_vmem [thread:$0]  %s42, 256, %s44, [#allocation7], 128, 128, 8
    $region9: #{tpu_custom_call.1} parent=1 // pred_fallthru
      _
    // Predicated region
    $region10: #{tpu_custom_call.1} parent=1 // pred_check
      _
    $region11: #{tpu_custom_call.1} parent=1 // pred_check_branch
      %51 = sbr.rel (0) target = $region13
    $region12: #{tpu_custom_call.1} parent=1 // pred_region
      %53 = vsyncadd [#allocation7], 0
      %s55 = sshll.u32 %s2, 4
      %s56 = int_to_ptr.hbm [resolvable:$true] %s55
      %s57 = sshll.u32 [#allocation8], 4
      %s58 = int_to_ptr.vmem [resolvable:$true] %s57
      %60 = dma.hbm_to_vmem [thread:$0]  %s56, 32, %s58, [#allocation7]
    $region13: #{tpu_custom_call.1} parent=1 // pred_fallthru
      _
    // Predicated region
    $region14: #{tpu_custom_call.1} parent=1 // pred_check
      _
    $region15: #{tpu_custom_call.1} parent=1 // pred_check_branch
      %62 = sbr.rel (0) target = $region17
    $region16: #{tpu_custom_call.1} parent=1 // pred_region
      _
    $region17: #{tpu_custom_call.1} parent=1 // pred_fallthru
      _
    // Predicated region
    $region18: #{tpu_custom_call.1} parent=1 // pred_check
      _
    $region19: #{tpu_custom_call.1} parent=1 // pred_check_branch
      %64 = sbr.rel (0) target = $region21
    $region20: #{tpu_custom_call.1} parent=1 // pred_region
      %66 = dma.done [#allocation4], 256
    $region21: #{tpu_custom_call.1} parent=1 // pred_fallthru
      _
    // Predicated region
    $region22: #{tpu_custom_call.1} parent=1 // pred_check
      _
    $region23: #{tpu_custom_call.1} parent=1 // pred_check_branch
      %68 = sbr.rel (0) target = $region25
    $region24: #{tpu_custom_call.1} parent=1 // pred_region
      %70 = dma.done [#allocation7], 256
    $region25: #{tpu_custom_call.1} parent=1 // pred_fallthru
      _
    // Predicated region
    $region26: #{tpu_custom_call.1} parent=1 // pred_check
      _
    $region27: #{tpu_custom_call.1} parent=1 // pred_check_branch
      %72 = sbr.rel (0) target = $region29
    $region28: #{tpu_custom_call.1} parent=1 // pred_region
      %74 = dma.done [#allocation7], 32
    $region29: #{tpu_custom_call.1} parent=1 // pred_fallthru
      _
    %s75 = sadd.s32 0, 0
    %p76 = scmp.lt.s32.totalorder %s75, 0
    %s77 = scalar_select %p76, %s75, 0
    %s78 = smul.u32 2, %s77
    %s79 = sadd.s32 0, 0
    %p80 = scmp.lt.s32.totalorder %s79, 0
    %s81 = scalar_select %p80, %s79, 0
    %s82 = smul.u32 2, %s81
    %p83 = scmp.eq.s32.totalorder 0, 0
    // Predicated region
    $region30: #{tpu_custom_call.1} parent=1 // pred_check
      %p84 = pneg %p83
    $region31: #{tpu_custom_call.1} parent=1 // pred_check_branch
      %86 = sbr.rel (%p84) target = $region33
    $region32: #{tpu_custom_call.1} parent=1 // pred_region
      %87 = vst [vmem:[#allocation2] sm:$0xff] 0.0
    $region33: #{tpu_custom_call.1} parent=1 // pred_fallthru
      _
    %v88 = vld [vmem:[#allocation3] sm:$0xff]
    %v89 = vld [vmem:[#allocation3 + $0x8] sm:$0xff]
    %v90 = vld [vmem:[#allocation6] sm:$0xff]
    %v91 = vld [vmem:[#allocation6 + $0x8] sm:$0xff]
    %v92 = vlog2.pop %v88
    %v93 = vmul.f32 %v92, 0.6931472
    %v94 = vlog2.pop %v89
    %v95 = vmul.f32 %v94, 0.6931472
    %v96 = vmax.f32 %v93, -100.0
    %v97 = vmax.f32 %v95, -100.0
    %v98 = vsub.f32 1.0, %v88
    %v99 = vsub.f32 1.0, %v89
    %v100 = vlog2.pop %v98
    %v101 = vmul.f32 %v100, 0.6931472
    %v102 = vlog2.pop %v99
    %v103 = vmul.f32 %v102, 0.6931472
    %v104 = vmax.f32 %v101, -100.0
    %v105 = vmax.f32 %v103, -100.0
    %v106 = vmul.f32 %v90, %v96
    %v107 = vmul.f32 %v91, %v97
    %v108 = vsub.f32 1.0, %v90
    %v109 = vsub.f32 1.0, %v91
    %v110 = vmul.f32 %v108, %v104
    %v111 = vmul.f32 %v109, %v105
    %v112 = vadd.f32 %v106, %v110
    %v113 = vadd.f32 %v107, %v111
    %v114 = vsub.f32 0.0, %v112
    %v115 = vsub.f32 0.0, %v113
    %v116 = vld [vmem:[#allocation2] sm:$0xff]
    %v117 = vadd.f32 %v114, %v115
    %v118 = vadd.f32 %v116, %v117
    %119 = vst [vmem:[#allocation2] sm:$0xff] %v118
    %p120 = scmp.eq.s32.totalorder 0, 0
    %p121 = pnand %p83, %p120
    %p122 = pneg %p121
    // Predicated region
    $region34: #{tpu_custom_call.1} parent=1 // pred_check
      _
    $region35: #{tpu_custom_call.1} parent=1 // pred_check_branch
      %124 = sbr.rel (%p121) target = $region37
    $region36: #{tpu_custom_call.1} parent=1 // pred_region
      %v125 = vld [vmem:[#allocation8] sm:$0x3]
      %v126 = vld [vmem:[%s3] sm:$0x3]
      %v127 = vadd.f32 %v126, 1.0
      %v128 = vmul.f32 %v125, %v125
      %v129 = vsub.f32 %v127, %v128
      %v130 = vmul.f32 %v126, 1.442695
      %v131 = vpow.pop %v130
      %v132 = vsub.f32 %v129, %v131
      %vm133 = vcmask 254976
      %v134 = vsel %vm133, %v132, 0.0
      %135 = vadd.xlane.f32.xlu0 %v134
      %v136 = vpop.xlane.xlu0 %135
      %v137 = vrot.slane %v136, 4
      %v138 = vadd.f32 %v136, %v137
      %v139 = vrot.slane %v138, 2
      %v140 = vadd.f32 %v138, %v139
      %v141 = vrot.slane %v140, 1
      %v142 = vadd.f32 %v140, %v141
      %s143 = vtos %v142
      %s144 = smul.f32 %s143, -0.5
      %v145 = vlaneseq
      %v146 = vshrl.u32 %v145, 7
      %v147 = vlaneseq
      %v148 = vand.u32 %v147, 127
      %v149 = vld [vmem:[#allocation2] sm:$0xff]
      %vm150 = vcmp.eq.s32.totalorder %v146, 0
      %vm151 = vcmp.eq.s32.totalorder %v148, 0
      %vm152 = vmand %vm150, %vm151
      %v153 = vstv %s144
      %v154 = vsel %vm152, %v153, 0.0
      %v155 = vadd.f32 %v149, %v154
      %156 = vst [vmem:[#allocation2] sm:$0xff] %v155
    $region37: #{tpu_custom_call.1} parent=1 // pred_fallthru
      _
    // Predicated region
    $region38: #{tpu_custom_call.1} parent=1 // pred_check
      %p157 = pneg %p83
    $region39: #{tpu_custom_call.1} parent=1 // pred_check_branch
      %159 = sbr.rel (%p157) target = $region41
    $region40: #{tpu_custom_call.1} parent=1 // pred_region
      %v160 = vld [vmem:[#allocation2] sm:$0xff]
      %161 = vst [vmem:[#allocation9] sm:$0xff] %v160
    $region41: #{tpu_custom_call.1} parent=1 // pred_fallthru
      _
    // Predicated region
    $region42: #{tpu_custom_call.1} parent=1 // pred_check
      _
    $region43: #{tpu_custom_call.1} parent=1 // pred_check_branch
      %163 = sbr.rel (0) target = $region45
    $region44: #{tpu_custom_call.1} parent=1 // pred_region
      %165 = vsyncadd [#allocation5], 0
      %s167 = sshll.u32 [#allocation9], 4
      %s168 = int_to_ptr.vmem [resolvable:$true] %s167
      %s169 = sshll.u32 %s4, 4
      %s170 = int_to_ptr.hbm [resolvable:$true] %s169
      %172 = dma.vmem_to_hbm [thread:$0]  %s168, 128, %s170, [#allocation5]
    $region45: #{tpu_custom_call.1} parent=1 // pred_fallthru
      _
    // Predicated region
    $region46: #{tpu_custom_call.1} parent=1 // pred_check
      _
    $region47: #{tpu_custom_call.1} parent=1 // pred_check_branch
      %174 = sbr.rel (0) target = $region49
    $region48: #{tpu_custom_call.1} parent=1 // pred_region
      %176 = dma.done [#allocation5], 128
    $region49: #{tpu_custom_call.1} parent=1 // pred_fallthru
      _
    %177 = vsyncpa [#allocation4], 1
    %178 = vsyncpa [#allocation7], 1
    %179 = vsyncpa [#allocation5], 1

</llo_original>
